<compile_context>
chip_gen: v7x
topology: tpu7x:2x2x1
jax: 0.10.0
libtpu: 0.0.40
codegen_flags: <defaults>
</compile_context>

<pallas_src>
import functools

import jax
import jax.numpy as jnp
from jax import lax
from jax.experimental import pallas as pl
from jax.experimental.pallas import tpu as pltpu


def _label_smoothing_kernel(logits_ref, labels_ref, out_ref, *,
                            confidence, smoothing, n_rows, n_cols, tile_rows):
    i = pl.program_id(0)

    x = logits_ref[...].astype(jnp.float32)                   # (TB, C)
    lab = labels_ref[...]                                      # (TB, 1) int32

    # Stable log-sum-exp pieces (2 cross-lane reductions + EUP exp/log).
    m = jnp.max(x, axis=-1, keepdims=True)                     # (TB, 1)
    lse = jnp.log(jnp.sum(jnp.exp(x - m), axis=-1, keepdims=True))  # (TB, 1)

    # Fused linear term:
    #   confidence * x[label] + smoothing * mean(x)
    #     = sum(x * w), w = where(col==label, confidence + s/C, s/C)
    base = smoothing / n_cols
    col = lax.broadcasted_iota(jnp.int32, x.shape, 1)           # (TB, C)
    w = jnp.where(col == lab, confidence + base, base)          # scalar consts
    fused = jnp.sum(x * w, axis=-1, keepdims=True)              # (TB, 1)

    # Since confidence + smoothing == 1:
    #   per-row loss = (m + lse) - fused
    per_row = (m + lse) - fused                                 # (TB, 1)

    # Mask rows past the true batch size (last tile may be partial / padded).
    row = i * tile_rows + lax.broadcasted_iota(jnp.int32, per_row.shape, 0)
    per_row = jnp.where(row < n_rows, per_row, 0.0)

    out_ref[...] = jnp.sum(per_row).reshape(1, 1, 1)


def _vmem_budget_bytes():
    """(footprint_budget, scoped_vmem_limit) branched per TPU generation."""
    try:
        phys = int(pltpu.get_tpu_info().vmem_capacity_bytes)
    except Exception:  # pragma: no cover - conservative fallback (v7x-safe)
        phys = 64 * 1024 * 1024
    scoped_limit = (phys * 3) // 4            # 48 MiB on v7x, 96 MiB on v5e/v6e
    footprint = scoped_limit - 8 * 1024 * 1024  # headroom for compiler scratch
    return max(footprint, 8 * 1024 * 1024), scoped_limit


def label_smoothing_loss(logits, labels, smoothing=0.1):
    """logits: (B, C) float (any dtype); labels: (B,) int. Returns scalar f32."""
    B, C = logits.shape
    confidence = 1.0 - smoothing
    labels2d = labels.astype(jnp.int32).reshape(B, 1)

    # Per-iteration VMEM footprint per row of tile:
    #   2 x native input (double buffer) + ~4 f32 tile-sized temporaries.
    itemsize = jnp.dtype(logits.dtype).itemsize
    bytes_per_row = C * (2 * itemsize + 4 * 4)
    footprint_budget, vmem_limit = _vmem_budget_bytes()

    if B >= 8:
        tb = max(1, footprint_budget // max(1, bytes_per_row))
        tb = max(8, (min(tb, B) // 8) * 8)   # sublane multiple, capped at B
    else:
        tb = B                               # block equals full array dim -> allowed
    num_tiles = pl.cdiv(B, tb)

    kernel = functools.partial(
        _label_smoothing_kernel,
        confidence=confidence, smoothing=smoothing,
        n_rows=B, n_cols=C, tile_rows=tb,
    )

    partials = pl.pallas_call(
        kernel,
        out_shape=jax.ShapeDtypeStruct((num_tiles, 1, 1), jnp.float32),
        grid_spec=pltpu.PrefetchScalarGridSpec(
            num_scalar_prefetch=0,
            grid=(num_tiles,),
            in_specs=[
                pl.BlockSpec((tb, C), lambda i: (i, 0)),
                pl.BlockSpec((tb, 1), lambda i: (i, 0)),
            ],
            out_specs=pl.BlockSpec((1, 1, 1), lambda i: (i, 0, 0)),
        ),
        compiler_params=pltpu.CompilerParams(
            dimension_semantics=("parallel",),
            vmem_limit_bytes=int(vmem_limit),
        ),
    )(logits, labels2d)

    # Exact batch mean: running sum of per-row losses / true B.
    # (Accumulation order differs slightly from a single fused mean; within
    #  normal f32 tolerance.)
    return jnp.sum(partials) / jnp.float32(B)


def _reference(logits, labels, smoothing=0.1):
    confidence = 1.0 - smoothing
    x = logits.astype(jnp.float32)
    logprobs = jax.nn.log_softmax(x, axis=-1)
    nll = -jnp.take_along_axis(
        logprobs, labels[:, None].astype(jnp.int32), axis=-1)[:, 0]
    smooth = -jnp.mean(logprobs, axis=-1)
    return jnp.mean(confidence * nll + smoothing * smooth)


if __name__ == "__main__":
    key = jax.random.PRNGKey(0)
    k1, k2 = jax.random.split(key)
    # B deliberately not a multiple of the 8-row tile to exercise the
    # multi-tile path and the partial-tile row masking.
    B, C = 12, 128
    logits = jax.random.normal(k1, (B, C), dtype=jnp.float32)
    labels = jax.random.randint(k2, (B,), 0, C, dtype=jnp.int32)

    loss = label_smoothing_loss(logits, labels)
    jax.block_until_ready(loss)

    ref = _reference(logits, labels)
    assert jnp.allclose(loss, ref, atol=1e-5, rtol=1e-5), (loss, ref)

    # Also check bf16 logits on the same path (native-dtype streaming + f32 math).
    logits_bf16 = logits.astype(jnp.bfloat16)
    loss_bf16 = label_smoothing_loss(logits_bf16, labels)
    jax.block_until_ready(loss_bf16)
    ref_bf16 = _reference(logits_bf16, labels)
    assert jnp.allclose(loss_bf16, ref_bf16, atol=1e-3, rtol=1e-3), (loss_bf16, ref_bf16)

    print("KERNEL_OK")
</pallas_src>

<mosaic_0001>
module attributes {stable_mosaic.version = 11 : i64} {
  func.func @_label_smoothing_kernel(%arg0: i32, %arg1: memref<8x128xf32, #tpu.memory_space<vmem>>, %arg2: memref<8x1xi32, #tpu.memory_space<vmem>>, %arg3: memref<1x1x1xf32, #tpu.memory_space<vmem>>) attributes {dimension_semantics = [#tpu.dimension_semantics<parallel>], iteration_bounds = array<i64: 2>, scalar_prefetch = 0 : i64, scratch_operands = 0 : i64, tpu.core_type = #tpu.core_type<tc>, window_params = [{transform_indices = @transform_0, window_bounds = array<i64: 8, 128>}, {transform_indices = @transform_1, window_bounds = array<i64: 8, 1>}, {transform_indices = @transform_2, window_bounds = array<i64: 1, 1, 1>}]} {
    %c0 = arith.constant 0 : index
    %c0_0 = arith.constant 0 : index
    %0 = vector.load %arg1[%c0, %c0_0] : memref<8x128xf32, #tpu.memory_space<vmem>>, vector<8x128xf32>
    %c0_1 = arith.constant 0 : index
    %c0_2 = arith.constant 0 : index
    %1 = vector.load %arg2[%c0_1, %c0_2] : memref<8x1xi32, #tpu.memory_space<vmem>>, vector<8x1xi32>
    %cst = arith.constant dense<0xFF800000> : vector<8xf32>
    %2 = vector.multi_reduction <maximumf>, %0, %cst [1] : vector<8x128xf32> to vector<8xf32>
    %3 = vector.shape_cast %2 : vector<8xf32> to vector<8x1xf32>
    %4 = vector.broadcast %3 : vector<8x1xf32> to vector<8x128xf32>
    %5 = arith.subf %0, %4 : vector<8x128xf32>
    %6 = math.exp %5 : vector<8x128xf32>
    %cst_3 = arith.constant dense<0.000000e+00> : vector<8xf32>
    %7 = vector.multi_reduction <add>, %6, %cst_3 [1] : vector<8x128xf32> to vector<8xf32>
    %8 = vector.shape_cast %7 : vector<8xf32> to vector<8x1xf32>
    %9 = math.log %8 : vector<8x1xf32>
    %10 = tpu.iota {dimensions = array<i32: 1>} : vector<8x128xi32>
    %11 = vector.broadcast %1 : vector<8x1xi32> to vector<8x128xi32>
    %12 = arith.cmpi eq, %10, %11 : vector<8x128xi32>
    %cst_4 = arith.constant 0.900781273 : f32
    %cst_5 = arith.constant 7.812500e-04 : f32
    %13 = vector.broadcast %cst_4 : f32 to vector<8x128xf32>
    %14 = vector.broadcast %cst_5 : f32 to vector<8x128xf32>
    %15 = arith.select %12, %13, %14 : vector<8x128xi1>, vector<8x128xf32>
    %16 = arith.mulf %0, %15 : vector<8x128xf32>
    %cst_6 = arith.constant dense<0.000000e+00> : vector<8xf32>
    %17 = vector.multi_reduction <add>, %16, %cst_6 [1] : vector<8x128xf32> to vector<8xf32>
    %18 = vector.shape_cast %17 : vector<8xf32> to vector<8x1xf32>
    %19 = arith.addf %3, %9 : vector<8x1xf32>
    %20 = arith.subf %19, %18 : vector<8x1xf32>
    %c8_i32 = arith.constant 8 : i32
    %21 = arith.muli %arg0, %c8_i32 : i32
    %22 = tpu.iota {dimensions = array<i32: 0>} : vector<8x1xi32>
    %23 = vector.broadcast %21 : i32 to vector<8x1xi32>
    %24 = arith.addi %23, %22 : vector<8x1xi32>
    %c12_i32 = arith.constant 12 : i32
    %25 = vector.broadcast %c12_i32 : i32 to vector<8x1xi32>
    %26 = arith.cmpi slt, %24, %25 : vector<8x1xi32>
    %cst_7 = arith.constant 0.000000e+00 : f32
    %27 = vector.broadcast %cst_7 : f32 to vector<8x1xf32>
    %28 = arith.select %26, %20, %27 : vector<8x1xi1>, vector<8x1xf32>
    %29 = vector.shape_cast %28 : vector<8x1xf32> to vector<1x8x1xf32>
    %cst_8 = arith.constant dense<0.000000e+00> : vector<1xf32>
    %30 = vector.multi_reduction <add>, %29, %cst_8 [1, 2] : vector<1x8x1xf32> to vector<1xf32>
    %31 = vector.shape_cast %30 : vector<1xf32> to vector<1x1x1xf32>
    %32 = vector.extract %31[0, 0, 0] : f32 from vector<1x1x1xf32>
    %33 = vector.broadcast %32 : f32 to vector<1x1x1xf32>
    %c0_9 = arith.constant 0 : index
    %c0_10 = arith.constant 0 : index
    %c0_11 = arith.constant 0 : index
    %34 = vector.load %arg3[%c0_9, %c0_10, %c0_11] : memref<1x1x1xf32, #tpu.memory_space<vmem>>, vector<1x1x1xf32>
    tpu.vector_store %arg3[%c0_9, %c0_10, %c0_11], %33 {strides = array<i32>} : memref<1x1x1xf32, #tpu.memory_space<vmem>>, vector<1x1x1xf32>,
    return
  }
  func.func @transform_0(%arg0: i32) -> (i32, i32) {
    %c0_i32 = arith.constant 0 : i32
    %c0_i32_0 = arith.constant 0 : i32
    return %arg0, %c0_i32 : i32, i32
  }
  func.func @transform_1(%arg0: i32) -> (i32, i32) {
    %c0_i32 = arith.constant 0 : i32
    %c0_i32_0 = arith.constant 0 : i32
    return %arg0, %c0_i32 : i32, i32
  }
  func.func @transform_2(%arg0: i32) -> (i32, i32, i32) {
    %c0_i32 = arith.constant 0 : i32
    %c0_i32_0 = arith.constant 0 : i32
    %c0_i32_1 = arith.constant 0 : i32
    return %arg0, %c0_i32, %c0_i32_0 : i32, i32, i32
  }
}

</mosaic_0001>

<llo_original>
// kernel: tpu_custom_call.1
$region0: #{tpu_custom_call.1}
  #allocation0 [shape = 'u32[]', space=smem, size = 0x4, offset = 0x4, fixed_abs, tag = 'smem constant byte address 0x4 - core index']
  #allocation1 [shape = 'u32[144,128]{1,0:T(1,128)}', space=vmem, size = 0x12000, scoped, tag = 'internal scratch']
  %s0 = inlined_call_operand.vmem [shape: f32[12,128], index: 0, kind: input, shape index: {}]
  %s1 = inlined_call_operand.vmem [shape: s32[12,1], index: 1, kind: input, shape index: {}]
  %s2 = inlined_call_operand.vmem [shape: f32[2,1,1], index: 2, kind: output, shape index: {}]
  %s3 = sld [smem:[#allocation0]]
  $region41: #{tpu_custom_call.1} parent=0
    _
  %s5 = ssub.s32 1, %s3
  %s6 = scalar_select 0, %s5, %s3
  loop: start=0, step=1, limit=4
  $region2: #{tpu_custom_call.1} parent=0 // loop_pre_header
    _
  $region3: #{tpu_custom_call.1} parent=0 // loop_header
    %s8 = sphi 0, %s12
    %p9 = scmp.ge.s32.totalorder %s8, 4
    %s18 = sphi 0, %s20
    %s21 = sphi 0, %s18
    %s22 = sphi 0, %s21
    %s38 = sphi 0, %s22
    %s44 = sphi 0, %s46
    %s47 = sphi 0, %s44
    %s48 = sphi 0, %s47
    %s64 = sphi 0, %s48
    %s70 = sphi 0, %s72
    %s73 = sphi 0, %s70
    %s74 = sphi 0, %s73
    %s90 = sphi 0, %s74
  $region4: #{tpu_custom_call.1} parent=0 // loop_header_branch
    %11 = sbr.rel (%p9) target = $region8
  $region5: #{tpu_custom_call.1} parent=0 // loop_body
    %s13 = ssub.s32 %s8, 1
    %s14 = ssub.s32 %s8, 2
    %s15 = sadd.s32 %s8, 1
    %s16 = ssub.s32 %s8, %s15
    %p17 = scmp.eq.s32.totalorder %s16, 0
    %s19 = sadd.s32 %s18, 1
    %s20 = scalar_select %p17, %s18, %s19
    %p23 = pneg %p17
    %p24 = scmp.eq.s32.totalorder %s8, 1
    %p25 = por %p23, %p24
    %p26 = scmp.ne.s32.totalorder %s18, %s21
    %p27 = scmp.eq.s32.totalorder %s8, 0
    %p28 = por %p26, %p27
    %p29 = scmp.ne.s32.totalorder %s18, %s21
    %p30 = scmp.eq.s32.totalorder %s13, 1
    %p31 = por %p29, %p30
    %p32 = scmp.ne.s32.totalorder %s21, %s22
    %p33 = scmp.eq.s32.totalorder %s13, 0
    %p34 = por %p32, %p33
    %p35 = scmp.ne.s32.totalorder %s21, %s22
    %p36 = scmp.eq.s32.totalorder %s14, 1
    %p37 = por %p35, %p36
    %p39 = scmp.ne.s32.totalorder %s22, %s38
    %p40 = scmp.eq.s32.totalorder %s14, 0
    %p41 = por %p39, %p40
    %s42 = ssub.s32 %s8, %s15
    %p43 = scmp.eq.s32.totalorder %s42, 0
    %s45 = sadd.s32 %s44, 1
    %s46 = scalar_select %p43, %s44, %s45
    %p49 = pneg %p43
    %p50 = scmp.eq.s32.totalorder %s8, 1
    %p51 = por %p49, %p50
    %p52 = scmp.ne.s32.totalorder %s44, %s47
    %p53 = scmp.eq.s32.totalorder %s8, 0
    %p54 = por %p52, %p53
    %p55 = scmp.ne.s32.totalorder %s44, %s47
    %p56 = scmp.eq.s32.totalorder %s13, 1
    %p57 = por %p55, %p56
    %p58 = scmp.ne.s32.totalorder %s47, %s48
    %p59 = scmp.eq.s32.totalorder %s13, 0
    %p60 = por %p58, %p59
    %p61 = scmp.ne.s32.totalorder %s47, %s48
    %p62 = scmp.eq.s32.totalorder %s14, 1
    %p63 = por %p61, %p62
    %p65 = scmp.ne.s32.totalorder %s48, %s64
    %p66 = scmp.eq.s32.totalorder %s14, 0
    %p67 = por %p65, %p66
    %s68 = ssub.s32 %s8, %s15
    %p69 = scmp.eq.s32.totalorder %s68, 0
    %s71 = sadd.s32 %s70, 1
    %s72 = scalar_select %p69, %s70, %s71
    %p75 = pneg %p69
    %p76 = scmp.eq.s32.totalorder %s8, 1
    %p77 = por %p75, %p76
    %p78 = scmp.ne.s32.totalorder %s70, %s73
    %p79 = scmp.eq.s32.totalorder %s8, 0
    %p80 = por %p78, %p79
    %p81 = scmp.ne.s32.totalorder %s70, %s73
    %p82 = scmp.eq.s32.totalorder %s13, 1
    %p83 = por %p81, %p82
    %p84 = scmp.ne.s32.totalorder %s73, %s74
    %p85 = scmp.eq.s32.totalorder %s13, 0
    %p86 = por %p84, %p85
    %p87 = scmp.ne.s32.totalorder %s73, %s74
    %p88 = scmp.eq.s32.totalorder %s14, 1
    %p89 = por %p87, %p88
    %p91 = scmp.ne.s32.totalorder %s74, %s90
    %p92 = scmp.eq.s32.totalorder %s14, 0
    %p93 = por %p91, %p92
    %p94 = scmp.le.s32.totalorder 1, %s8
    %p95 = scmp.lt.s32.totalorder %s8, 3
    %p96 = pnand %p94, %p95
    %p97 = pneg %p96
    // Predicated region
    $region9: #{tpu_custom_call.1} parent=5 // pred_check
      _
    $region10: #{tpu_custom_call.1} parent=5 // pred_check_branch
      %99 = sbr.rel (%p96) target = $region12
    $region11: #{tpu_custom_call.1} parent=5 // pred_region
      %s100 = ssub.s32 %s8, 1
    $region12: #{tpu_custom_call.1} parent=5 // pred_fallthru
      _
    %p101 = scmp.lt.s32.totalorder %s8, 2
    // Predicated region
    $region13: #{tpu_custom_call.1} parent=5 // pred_check
      %p102 = pneg %p101
    $region14: #{tpu_custom_call.1} parent=5 // pred_check_branch
      %104 = sbr.rel (%p102) target = $region16
    $region15: #{tpu_custom_call.1} parent=5 // pred_region
      // Predicated region
      $region17: #{tpu_custom_call.1} parent=15 // pred_check
        %p105 = pneg %p28
      $region18: #{tpu_custom_call.1} parent=15 // pred_check_branch
        %107 = sbr.rel (%p105) target = $region20
      $region19: #{tpu_custom_call.1} parent=15 // pred_region
        %p108 = scmp.lt.s32.totalorder %s8, 1
        %s109 = scalar_select %p108, %s8, 1
        %s110 = smul.addr %s109, 8
        %s111 = scalar_lea.vmem %s0, %s110
      $region20: #{tpu_custom_call.1} parent=15 // pred_fallthru
        _
      // Predicated region
      $region21: #{tpu_custom_call.1} parent=15 // pred_check
        %p112 = pneg %p54
      $region22: #{tpu_custom_call.1} parent=15 // pred_check_branch
        %114 = sbr.rel (%p112) target = $region24
      $region23: #{tpu_custom_call.1} parent=15 // pred_region
        %p115 = scmp.lt.s32.totalorder %s8, 1
        %s116 = scalar_select %p115, %s8, 1
        %s117 = smul.addr %s116, 8
        %s118 = scalar_lea.vmem %s1, %s117
      $region24: #{tpu_custom_call.1} parent=15 // pred_fallthru
        _
    $region16: #{tpu_custom_call.1} parent=5 // pred_fallthru
      _
    %p119 = scmp.le.s32.totalorder 1, %s8
    %p120 = scmp.lt.s32.totalorder %s8, 3
    %p121 = pnand %p119, %p120
    %p122 = pneg %p121
    // Predicated region
    $region25: #{tpu_custom_call.1} parent=5 // pred_check
      _
    $region26: #{tpu_custom_call.1} parent=5 // pred_check_branch
      %124 = sbr.rel (%p121) target = $region28
    $region27: #{tpu_custom_call.1} parent=5 // pred_region
      %s125 = ssub.s32 %s8, 1
      %p126 = scmp.lt.s32.totalorder %s13, 1
      %s127 = scalar_select %p126, %s13, 1
      %s128 = smul.addr %s127, 8
      %s129 = scalar_lea.vmem %s0, %s128
      %p130 = pneg %p34
      %p131 = pneg %p31
      %p132 = scmp.lt.s32.totalorder %s13, 1
      %s133 = scalar_select %p132, %s13, 1
      %s134 = smul.addr %s133, 8
      %s135 = scalar_lea.vmem %s1, %s134
      %p136 = pneg %p60
      %p137 = pneg %p57
      %p138 = pneg %p86
      %p139 = pneg %p83
      %p140 = scmp.lt.s32.totalorder %s13, 1
      %s141 = scalar_select %p140, %s13, 1
      %s142 = scalar_lea.vmem %s2, %s141
      %p143 = scmp.lt.s32.totalorder %s13, 1
      %s144 = scalar_select %p143, %s13, 1
      %s145 = smul.addr %s144, 8
      %s146 = scalar_lea.vmem %s0, %s145
      %p147 = scmp.lt.s32.totalorder %s13, 1
      %s148 = scalar_select %p147, %s13, 1
      %s149 = smul.addr %s148, 8
      %s150 = scalar_lea.vmem %s1, %s149
      %p151 = scmp.lt.s32.totalorder %s13, 1
      %s152 = scalar_select %p151, %s13, 1
      %s153 = scalar_lea.vmem %s2, %s152
      %v154 = vld [vmem:[%s146] sm:$0xff]
      %v155 = vld [vmem:[%s150] sm:$0xff]
      %156 = vmax.xlane.f32.xlu0 %v154
      %v157 = vpop.xlane.xlu0 %156
      %v158 = vsub.f32 %v154, %v157
      %v159 = vmul.f32 %v158, 1.442695
      %v160 = vpow.pop %v159
      %161 = vadd.xlane.f32.xlu0 %v160
      %v162 = vpop.xlane.xlu0 %161
      %v163 = vlog2.pop %v162
      %v164 = vmul.f32 %v163, 0.6931472
      %v165 = vlaneseq
      %v166 = vand.u32 %v165, 127
      %167 = vset.pattern.permute.xlu0 0
      %168 = vperm.xlu0 %167, %v155
      %v169 = vpop.permute.xlu0 %168
      %vm170 = vcmp.eq.s32.totalorder %v166, %v169
      %v171 = vsel %vm170, 0.9007813, 0.00078125
      %v172 = vmul.f32 %v154, %v171
      %173 = vadd.xlane.f32.xlu0 %v172
      %v174 = vpop.xlane.xlu0 %173
      %v175 = vadd.f32 %v157, %v164
      %v176 = vsub.f32 %v175, %v174
      %s177 = smul.u32 %s13, 8
      %v178 = vlaneseq
      %v179 = vshrl.u32 %v178, 7
      %v180 = vstv %s177
      %v181 = vadd.s32 %v180, %v179
      %vm182 = vcmp.lt.s32.totalorder %v181, 12
      %v183 = vsel %vm182, %v176, 0.0
      %vm184 = vcmask 7168
      %v185 = vsel %vm184, %v183, 0.0
      %186 = vadd.xlane.f32.xlu0 %v185
      %v187 = vpop.xlane.xlu0 %186
      %v188 = vrot.slane %v187, 4
      %v189 = vadd.f32 %v187, %v188
      %v190 = vrot.slane %v189, 2
      %v191 = vadd.f32 %v189, %v190
      %v192 = vrot.slane %v191, 1
      %v193 = vadd.f32 %v191, %v192
      %s194 = vtos %v193
      %v195 = vstv %s194
      %vm196 = vcmask 0
      %197 = vst.msk [vmem:[%s153] sm:$0x1] %vm196, %v195
      %p198 = scmp.lt.s32.totalorder %s13, 1
      %s199 = scalar_select %p198, %s13, 1
      %s200 = scalar_lea.vmem %s2, %s199
      // Predicated region
      $region29: #{tpu_custom_call.1} parent=27 // pred_check
        %p201 = pneg %p83
      $region30: #{tpu_custom_call.1} parent=27 // pred_check_branch
        %203 = sbr.rel (%p201) target = $region32
      $region31: #{tpu_custom_call.1} parent=27 // pred_region
        _
      $region32: #{tpu_custom_call.1} parent=27 // pred_fallthru
        _
    $region28: #{tpu_custom_call.1} parent=5 // pred_fallthru
      _
    %p204 = scmp.le.s32.totalorder 2, %s8
    // Predicated region
    $region33: #{tpu_custom_call.1} parent=5 // pred_check
      %p205 = pneg %p204
    $region34: #{tpu_custom_call.1} parent=5 // pred_check_branch
      %207 = sbr.rel (%p205) target = $region36
    $region35: #{tpu_custom_call.1} parent=5 // pred_region
      %s208 = ssub.s32 %s8, 2
      // Predicated region
      $region37: #{tpu_custom_call.1} parent=35 // pred_check
        %p209 = pneg %p89
      $region38: #{tpu_custom_call.1} parent=35 // pred_check_branch
        %211 = sbr.rel (%p209) target = $region40
      $region39: #{tpu_custom_call.1} parent=35 // pred_region
        %p212 = scmp.lt.s32.totalorder %s14, 1
        %s213 = scalar_select %p212, %s14, 1
        %s214 = scalar_lea.vmem %s2, %s213
      $region40: #{tpu_custom_call.1} parent=35 // pred_fallthru
        _
    $region36: #{tpu_custom_call.1} parent=5 // pred_fallthru
      _
  $region6: #{tpu_custom_call.1} parent=0 // loop_footer
    %s12 = sadd.s32 1, %s8
  $region7: #{tpu_custom_call.1} parent=0 // loop_footer_branch
    %7 = sbr.rel target = $region3
  $region8: #{tpu_custom_call.1} parent=0 // loop_exit
    _

</llo_original>
